<compile_context>
chip_gen: v5e
topology: v5e:2x2
jax: 0.10.0
libtpu: 0.0.40
codegen_flags: <defaults>
</compile_context>

<pallas_src>
import functools
import math

import jax
import jax.numpy as jnp
from jax import lax
from jax.experimental import pallas as pl
from jax.experimental.pallas import tpu as pltpu


# ----------------------------------------------------------------------------
# Range-reduced sine (f32). Valid for moderate |z| (a few tens after w0-fold).
# ----------------------------------------------------------------------------
_INV_PI = 1.0 / math.pi
_PI_HI = 3.140625                    # exact in f32 (12 mantissa bits)
_PI_LO = math.pi - _PI_HI            # Cody-Waite low part
# Odd Taylor coefficients up to x^11: |err| < 1e-7 on [-pi/2, pi/2].
_S3, _S5, _S7, _S9, _S11 = (-1.0 / 6.0, 1.0 / 120.0, -1.0 / 5040.0,
                            1.0 / 362880.0, -1.0 / 39916800.0)


def _fast_sin(z):
    """sin(z) via Cody-Waite reduction + degree-11 odd polynomial (f32)."""
    k = jnp.round(z * _INV_PI)           # nearest multiple of pi
    r = z - k * _PI_HI
    r = r - k * _PI_LO                   # r in [-pi/2, pi/2]
    r2 = r * r
    p = _S11
    p = p * r2 + _S9
    p = p * r2 + _S7
    p = p * r2 + _S5
    p = p * r2 + _S3
    s = (p * r2 + 1.0) * r
    # sin(r + k*pi) = (-1)^k sin(r); parity with pure float ops (k is integral).
    parity = k - 2.0 * jnp.floor(k * 0.5)
    return s * (1.0 - 2.0 * parity)


# ----------------------------------------------------------------------------
# Fused kernel
# ----------------------------------------------------------------------------
def _siren_fused_kernel(x_ref, w_first_ref, w_hidden_ref, w_skip_ref, b_ref,
                        w_last_ref, b_last_ref, o_ref, *,
                        num_layers, skip_slot, use_fast_sin, bf16_act):
    # x_ref:        (TILE_N, dim_in)        coords, natural row-major layout
    # w_first_ref:  (dh, dim_in)            layer-0 weight   (w0 folded in)
    # w_hidden_ref: (max(L-1,1), dh, dh)    layers 1..L-1    (w0 folded in)
    # w_skip_ref:   (max(S,1), dh, dim_in)  skip-path weights, skip layers only
    # b_ref:        (L, dh, 1)              biases (w0 folded in)
    # w_last_ref:   (dim_out, dh)           final linear (identity activation)
    # b_last_ref:   (dim_out, 1)
    # o_ref:        (dim_out, TILE_N)       lane-dense output
    x_in = x_ref[...]

    dimnums = (((1,), (1,)), ((), ()))   # contract the dim_in axes (rhs transposed)

    def skip_term(l):
        return lax.dot_general(w_skip_ref[skip_slot[l]], x_in, dimnums,
                               preferred_element_type=jnp.float32)

    def act(z, b):
        if bf16_act:
            # v6e/v7x only (bf16 VPU) -- relaxes accuracy; keep off on v5e.
            return jnp.sin(z.astype(jnp.bfloat16)
                           + b.astype(jnp.bfloat16)).astype(jnp.float32)
        zb = z + b
        return _fast_sin(zb) if use_fast_sin else jnp.sin(zb)

    # Layer 0.
    z = lax.dot_general(w_first_ref[...], x_in, dimnums,
                        preferred_element_type=jnp.float32)       # (dh, TILE_N)
    if skip_slot[0] >= 0:
        z = z + skip_term(0)
    h = act(z, b_ref[0])

    # Hidden layers 1..L-1 (static unroll; num_layers is small).
    for l in range(1, num_layers):
        z = jnp.dot(w_hidden_ref[l - 1], h, preferred_element_type=jnp.float32)
        if skip_slot[l] >= 0:
            z = z + skip_term(l)
        h = act(z, b_ref[l])

    # Final linear layer (identity activation).
    y = jnp.dot(w_last_ref[...], h, preferred_element_type=jnp.float32)
    y = y + b_last_ref[...]
    o_ref[...] = y.astype(o_ref.dtype)


def _fixed_index_map(ndim):
    return lambda i: (0,) * ndim


def _choose_tile_n(n, *, min_steps=8, max_tile=4096, min_tile=128):
    """Largest multiple of 128 giving >= min_steps grid steps, VMEM-capped."""
    tile = (n // min_steps) // 128 * 128
    return int(max(min_tile, min(max_tile, tile)))


# ----------------------------------------------------------------------------
# Wrapper
# ----------------------------------------------------------------------------
def siren_net_forward(x, packed, skip_slot, *, tile_n=None, use_fast_sin=True,
                      bf16_act=False):
    """x: (N, dim_in) float32 -> (N, dim_out)."""
    n, dim_in = x.shape
    num_layers = packed["b_all"].shape[0]
    dim_out = packed["w_last"].shape[0]

    if tile_n is None:
        tile_n = _choose_tile_n(n)
    grid = (pl.cdiv(n, tile_n),)   # ragged last block handled by Pallas clipping

    kernel = functools.partial(
        _siren_fused_kernel, num_layers=num_layers,
        skip_slot=tuple(int(s) for s in skip_slot),
        use_fast_sin=use_fast_sin, bf16_act=bf16_act)

    yt = pl.pallas_call(
        kernel,
        out_shape=jax.ShapeDtypeStruct((dim_out, n), x.dtype),
        grid=grid,
        in_specs=[
            # Coordinate tile: streamed / double-buffered, natural layout.
            pl.BlockSpec((tile_n, dim_in), lambda i: (i, 0)),
            # Parameters: full-array blocks, constant index_map ->
            # DMA'd to VMEM once and kept resident across all grid steps.
            pl.BlockSpec(packed["w_first"].shape, _fixed_index_map(2)),
            pl.BlockSpec(packed["w_hidden"].shape, _fixed_index_map(3)),
            pl.BlockSpec(packed["w_skip"].shape, _fixed_index_map(3)),
            pl.BlockSpec(packed["b_all"].shape, _fixed_index_map(3)),
            pl.BlockSpec(packed["w_last"].shape, _fixed_index_map(2)),
            pl.BlockSpec(packed["b_last"].shape, _fixed_index_map(2)),
        ],
        # Lane-dense output (N on the lane axis).
        out_specs=pl.BlockSpec((dim_out, tile_n), lambda i: (0, i)),
        compiler_params=pltpu.CompilerParams(
            dimension_semantics=("parallel",),   # shard grid across TCs (v7x)
            vmem_limit_bytes=32 * 1024 * 1024,
        ),
    )(x, packed["w_first"], packed["w_hidden"], packed["w_skip"],
      packed["b_all"], packed["w_last"], packed["b_last"])

    return yt.T


# ----------------------------------------------------------------------------
# Parameter construction (matches SirenLayer.init_ distributions) and packing
# ----------------------------------------------------------------------------
def init_siren_params(key, dim_in, dim_hidden, dim_out, num_layers, skip,
                      w0=30.0, w0_initial=30.0, c=6.0):
    skip_flags = [i in skip for i in range(num_layers)]
    params = []
    for ind in range(num_layers):
        is_first = ind == 0
        layer_w0 = w0_initial if is_first else w0
        layer_dim_in = (dim_in if is_first else dim_hidden) + (dim_in if skip_flags[ind] else 0)
        w_std = (1.0 / layer_dim_in) if is_first else (math.sqrt(c / layer_dim_in) / layer_w0)
        key, kw, kb = jax.random.split(key, 3)
        w = jax.random.uniform(kw, (dim_hidden, layer_dim_in),
                               minval=-w_std, maxval=w_std, dtype=jnp.float32)
        b = jax.random.uniform(kb, (dim_hidden,),
                               minval=-w_std, maxval=w_std, dtype=jnp.float32)
        params.append((w, b, layer_w0))
    w_std = math.sqrt(c / dim_hidden) / w0
    key, kw, kb = jax.random.split(key, 3)
    w_last = jax.random.uniform(kw, (dim_out, dim_hidden),
                                minval=-w_std, maxval=w_std, dtype=jnp.float32)
    b_last = jax.random.uniform(kb, (dim_out,),
                                minval=-w_std, maxval=w_std, dtype=jnp.float32)
    return params, (w_last, b_last, w0), skip_flags


def pack_siren_params(params, last_params, skip_flags, dim_in, dim_hidden):
    """One-time packing: fold w0 into W/b, split skip weights, drop dead slots."""
    w_first = None
    w_hidden, w_skip, b_all, skip_slot = [], [], [], []
    for l, (w, b, layer_w0) in enumerate(params):
        ws = layer_w0 * w                       # fold w0 into weight ...
        bs = layer_w0 * b                       # ... and bias
        main_in = dim_in if l == 0 else dim_hidden
        w_main = ws[:, :main_in]
        if skip_flags[l]:
            skip_slot.append(len(w_skip))
            w_skip.append(ws[:, main_in:main_in + dim_in])   # skip cols = (x, i) order
        else:
            skip_slot.append(-1)
        if l == 0:
            w_first = w_main                                  # (dh, dim_in)
        else:
            w_hidden.append(w_main)                           # (dh, dh)
        b_all.append(bs.reshape(dim_hidden, 1))
    if not w_hidden:   # single-layer net: placeholder (never indexed)
        w_hidden.append(jnp.zeros((dim_hidden, dim_hidden), jnp.float32))
    if not w_skip:     # no skip layers: placeholder (never indexed)
        w_skip.append(jnp.zeros((dim_hidden, dim_in), jnp.float32))
    w_last, b_last, _ = last_params
    packed = dict(
        w_first=w_first,                     # (dh, dim_in)
        w_hidden=jnp.stack(w_hidden),        # (L-1, dh, dh)       [or placeholder]
        w_skip=jnp.stack(w_skip),            # (n_skip, dh, dim_in)[or placeholder]
        b_all=jnp.stack(b_all),              # (L, dh, 1)
        w_last=w_last,                       # (dim_out, dh)
        b_last=b_last.reshape(-1, 1),        # (dim_out, 1)
    )
    return packed, tuple(skip_slot)


# ----------------------------------------------------------------------------
# Pure-JAX reference (unpacked params, exactly mirrors the PyTorch module)
# ----------------------------------------------------------------------------
def siren_net_reference(x, params, last_params, skip_flags):
    i = x
    for k, (w, b, layer_w0) in enumerate(params):
        inp = x if not skip_flags[k] else jnp.concatenate((x, i), axis=-1)
        x = jnp.sin(layer_w0 * (inp @ w.T + b))
    w_last, b_last, _ = last_params
    return x @ w_last.T + b_last


if __name__ == "__main__":
    # Small SIREN: 3-D coords, hidden 32, output 4, 4 layers, skip at layer 2.
    dim_in, dim_hidden, dim_out, num_layers = 3, 32, 4, 4
    skip = [2]
    n = 1000   # not a multiple of the tile -> exercises the ragged last block

    key = jax.random.PRNGKey(0)
    key, kx = jax.random.split(key)
    x = jax.random.uniform(kx, (n, dim_in), minval=-1.0, maxval=1.0,
                           dtype=jnp.float32)

    params, last_params, skip_flags = init_siren_params(
        key, dim_in, dim_hidden, dim_out, num_layers, skip)
    packed, skip_slot = pack_siren_params(params, last_params, skip_flags,
                                          dim_in, dim_hidden)

    # Auto tile (here: 128 -> 8 grid steps); f32 math + fast-sin path.
    out = siren_net_forward(x, packed, skip_slot)
    out = jax.block_until_ready(out)

    ref = siren_net_reference(x, params, last_params, skip_flags)
    assert out.shape == (n, dim_out), out.shape
    # w0-folding + fast-sin polynomial + MXU accumulation order -> sub-1e-5 diffs.
    assert jnp.allclose(out, ref, atol=1e-4, rtol=1e-4), "mismatch vs reference"

    print("KERNEL_OK")
</pallas_src>

<mosaic_0001>
module attributes {stable_mosaic.version = 11 : i64} {
  func.func @_siren_fused_kernel(%arg0: i32, %arg1: memref<128x3xf32, #tpu.memory_space<vmem>>, %arg2: memref<32x3xf32, #tpu.memory_space<vmem>>, %arg3: memref<3x32x32xf32, #tpu.memory_space<vmem>>, %arg4: memref<1x32x3xf32, #tpu.memory_space<vmem>>, %arg5: memref<4x32x1xf32, #tpu.memory_space<vmem>>, %arg6: memref<4x32xf32, #tpu.memory_space<vmem>>, %arg7: memref<4x1xf32, #tpu.memory_space<vmem>>, %arg8: memref<4x128xf32, #tpu.memory_space<vmem>>) attributes {dimension_semantics = [#tpu.dimension_semantics<parallel>], iteration_bounds = array<i64: 8>, scalar_prefetch = 0 : i64, scratch_operands = 0 : i64, tpu.core_type = #tpu.core_type<tc>, window_params = [{transform_indices = @transform_0, window_bounds = array<i64: 128, 3>}, {pipeline_mode = #tpu.pipeline_mode<synchronous>, transform_indices = @transform_1, window_bounds = array<i64: 32, 3>}, {pipeline_mode = #tpu.pipeline_mode<synchronous>, transform_indices = @transform_2, window_bounds = array<i64: 3, 32, 32>}, {pipeline_mode = #tpu.pipeline_mode<synchronous>, transform_indices = @transform_3, window_bounds = array<i64: 1, 32, 3>}, {pipeline_mode = #tpu.pipeline_mode<synchronous>, transform_indices = @transform_4, window_bounds = array<i64: 4, 32, 1>}, {pipeline_mode = #tpu.pipeline_mode<synchronous>, transform_indices = @transform_5, window_bounds = array<i64: 4, 32>}, {pipeline_mode = #tpu.pipeline_mode<synchronous>, transform_indices = @transform_6, window_bounds = array<i64: 4, 1>}, {transform_indices = @transform_7, window_bounds = array<i64: 4, 128>}]} {
    %c0 = arith.constant 0 : index
    %c0_0 = arith.constant 0 : index
    %0 = vector.load %arg1[%c0, %c0_0] : memref<128x3xf32, #tpu.memory_space<vmem>>, vector<128x3xf32>
    %c0_1 = arith.constant 0 : index
    %c0_2 = arith.constant 0 : index
    %1 = vector.load %arg2[%c0_1, %c0_2] : memref<32x3xf32, #tpu.memory_space<vmem>>, vector<32x3xf32>
    %cst = arith.constant dense<0.000000e+00> : vector<32x128xf32>
    %2 = tpu.matmul %1, %0, %cst {dimension_numbers = #tpu.dot_dimension_numbers<[1], [1], [0], [0], [0, 0, 1, 0], [], []>} : vector<32x3xf32>, vector<128x3xf32>, vector<32x128xf32> -> vector<32x128xf32>
    %c0_3 = arith.constant 0 : index
    %c0_4 = arith.constant 0 : index
    %c0_5 = arith.constant 0 : index
    %3 = vector.load %arg5[%c0_3, %c0_4, %c0_5] : memref<4x32x1xf32, #tpu.memory_space<vmem>>, vector<1x32x1xf32>
    %4 = vector.shape_cast %3 : vector<1x32x1xf32> to vector<32x1xf32>
    %5 = vector.broadcast %4 : vector<32x1xf32> to vector<32x128xf32>
    %6 = arith.addf %2, %5 : vector<32x128xf32>
    %cst_6 = arith.constant 0.318309873 : f32
    %7 = vector.broadcast %cst_6 : f32 to vector<32x128xf32>
    %8 = arith.mulf %6, %7 : vector<32x128xf32>
    %9 = math.roundeven %8 : vector<32x128xf32>
    %cst_7 = arith.constant 3.140625 : f32
    %10 = vector.broadcast %cst_7 : f32 to vector<32x128xf32>
    %11 = arith.mulf %9, %10 : vector<32x128xf32>
    %12 = arith.subf %6, %11 : vector<32x128xf32>
    %cst_8 = arith.constant 9.67653584E-4 : f32
    %13 = vector.broadcast %cst_8 : f32 to vector<32x128xf32>
    %14 = arith.mulf %9, %13 : vector<32x128xf32>
    %15 = arith.subf %12, %14 : vector<32x128xf32>
    %16 = arith.mulf %15, %15 : vector<32x128xf32>
    %cst_9 = arith.constant -2.50521079E-8 : f32
    %17 = vector.broadcast %cst_9 : f32 to vector<32x128xf32>
    %18 = arith.mulf %17, %16 : vector<32x128xf32>
    %cst_10 = arith.constant 2.75573188E-6 : f32
    %19 = vector.broadcast %cst_10 : f32 to vector<32x128xf32>
    %20 = arith.addf %18, %19 : vector<32x128xf32>
    %21 = arith.mulf %20, %16 : vector<32x128xf32>
    %cst_11 = arith.constant -1.98412701E-4 : f32
    %22 = vector.broadcast %cst_11 : f32 to vector<32x128xf32>
    %23 = arith.addf %21, %22 : vector<32x128xf32>
    %24 = arith.mulf %23, %16 : vector<32x128xf32>
    %cst_12 = arith.constant 0.00833333377 : f32
    %25 = vector.broadcast %cst_12 : f32 to vector<32x128xf32>
    %26 = arith.addf %24, %25 : vector<32x128xf32>
    %27 = arith.mulf %26, %16 : vector<32x128xf32>
    %cst_13 = arith.constant -0.166666672 : f32
    %28 = vector.broadcast %cst_13 : f32 to vector<32x128xf32>
    %29 = arith.addf %27, %28 : vector<32x128xf32>
    %30 = arith.mulf %29, %16 : vector<32x128xf32>
    %cst_14 = arith.constant 1.000000e+00 : f32
    %31 = vector.broadcast %cst_14 : f32 to vector<32x128xf32>
    %32 = arith.addf %30, %31 : vector<32x128xf32>
    %33 = arith.mulf %32, %15 : vector<32x128xf32>
    %cst_15 = arith.constant 5.000000e-01 : f32
    %34 = vector.broadcast %cst_15 : f32 to vector<32x128xf32>
    %35 = arith.mulf %9, %34 : vector<32x128xf32>
    %36 = math.floor %35 : vector<32x128xf32>
    %cst_16 = arith.constant 2.000000e+00 : f32
    %37 = vector.broadcast %cst_16 : f32 to vector<32x128xf32>
    %38 = arith.mulf %37, %36 : vector<32x128xf32>
    %39 = arith.subf %9, %38 : vector<32x128xf32>
    %cst_17 = arith.constant 2.000000e+00 : f32
    %40 = vector.broadcast %cst_17 : f32 to vector<32x128xf32>
    %41 = arith.mulf %40, %39 : vector<32x128xf32>
    %cst_18 = arith.constant 1.000000e+00 : f32
    %42 = vector.broadcast %cst_18 : f32 to vector<32x128xf32>
    %43 = arith.subf %42, %41 : vector<32x128xf32>
    %44 = arith.mulf %33, %43 : vector<32x128xf32>
    %c0_19 = arith.constant 0 : index
    %c0_20 = arith.constant 0 : index
    %c0_21 = arith.constant 0 : index
    %45 = vector.load %arg3[%c0_19, %c0_20, %c0_21] : memref<3x32x32xf32, #tpu.memory_space<vmem>>, vector<1x32x32xf32>
    %46 = vector.shape_cast %45 : vector<1x32x32xf32> to vector<32x32xf32>
    %cst_22 = arith.constant dense<0.000000e+00> : vector<32x128xf32>
    %47 = tpu.matmul %46, %44, %cst_22 {dimension_numbers = #tpu.dot_dimension_numbers<[1], [0], [0], [1], [0, 0, 1, 1], [], []>} : vector<32x32xf32>, vector<32x128xf32>, vector<32x128xf32> -> vector<32x128xf32>
    %c1 = arith.constant 1 : index
    %c0_23 = arith.constant 0 : index
    %c0_24 = arith.constant 0 : index
    %48 = vector.load %arg5[%c1, %c0_23, %c0_24] : memref<4x32x1xf32, #tpu.memory_space<vmem>>, vector<1x32x1xf32>
    %49 = vector.shape_cast %48 : vector<1x32x1xf32> to vector<32x1xf32>
    %50 = vector.broadcast %49 : vector<32x1xf32> to vector<32x128xf32>
    %51 = arith.addf %47, %50 : vector<32x128xf32>
    %cst_25 = arith.constant 0.318309873 : f32
    %52 = vector.broadcast %cst_25 : f32 to vector<32x128xf32>
    %53 = arith.mulf %51, %52 : vector<32x128xf32>
    %54 = math.roundeven %53 : vector<32x128xf32>
    %cst_26 = arith.constant 3.140625 : f32
    %55 = vector.broadcast %cst_26 : f32 to vector<32x128xf32>
    %56 = arith.mulf %54, %55 : vector<32x128xf32>
    %57 = arith.subf %51, %56 : vector<32x128xf32>
    %cst_27 = arith.constant 9.67653584E-4 : f32
    %58 = vector.broadcast %cst_27 : f32 to vector<32x128xf32>
    %59 = arith.mulf %54, %58 : vector<32x128xf32>
    %60 = arith.subf %57, %59 : vector<32x128xf32>
    %61 = arith.mulf %60, %60 : vector<32x128xf32>
    %cst_28 = arith.constant -2.50521079E-8 : f32
    %62 = vector.broadcast %cst_28 : f32 to vector<32x128xf32>
    %63 = arith.mulf %62, %61 : vector<32x128xf32>
    %cst_29 = arith.constant 2.75573188E-6 : f32
    %64 = vector.broadcast %cst_29 : f32 to vector<32x128xf32>
    %65 = arith.addf %63, %64 : vector<32x128xf32>
    %66 = arith.mulf %65, %61 : vector<32x128xf32>
    %cst_30 = arith.constant -1.98412701E-4 : f32
    %67 = vector.broadcast %cst_30 : f32 to vector<32x128xf32>
    %68 = arith.addf %66, %67 : vector<32x128xf32>
    %69 = arith.mulf %68, %61 : vector<32x128xf32>
    %cst_31 = arith.constant 0.00833333377 : f32
    %70 = vector.broadcast %cst_31 : f32 to vector<32x128xf32>
    %71 = arith.addf %69, %70 : vector<32x128xf32>
    %72 = arith.mulf %71, %61 : vector<32x128xf32>
    %cst_32 = arith.constant -0.166666672 : f32
    %73 = vector.broadcast %cst_32 : f32 to vector<32x128xf32>
    %74 = arith.addf %72, %73 : vector<32x128xf32>
    %75 = arith.mulf %74, %61 : vector<32x128xf32>
    %cst_33 = arith.constant 1.000000e+00 : f32
    %76 = vector.broadcast %cst_33 : f32 to vector<32x128xf32>
    %77 = arith.addf %75, %76 : vector<32x128xf32>
    %78 = arith.mulf %77, %60 : vector<32x128xf32>
    %cst_34 = arith.constant 5.000000e-01 : f32
    %79 = vector.broadcast %cst_34 : f32 to vector<32x128xf32>
    %80 = arith.mulf %54, %79 : vector<32x128xf32>
    %81 = math.floor %80 : vector<32x128xf32>
    %cst_35 = arith.constant 2.000000e+00 : f32
    %82 = vector.broadcast %cst_35 : f32 to vector<32x128xf32>
    %83 = arith.mulf %82, %81 : vector<32x128xf32>
    %84 = arith.subf %54, %83 : vector<32x128xf32>
    %cst_36 = arith.constant 2.000000e+00 : f32
    %85 = vector.broadcast %cst_36 : f32 to vector<32x128xf32>
    %86 = arith.mulf %85, %84 : vector<32x128xf32>
    %cst_37 = arith.constant 1.000000e+00 : f32
    %87 = vector.broadcast %cst_37 : f32 to vector<32x128xf32>
    %88 = arith.subf %87, %86 : vector<32x128xf32>
    %89 = arith.mulf %78, %88 : vector<32x128xf32>
    %c1_38 = arith.constant 1 : index
    %c0_39 = arith.constant 0 : index
    %c0_40 = arith.constant 0 : index
    %90 = vector.load %arg3[%c1_38, %c0_39, %c0_40] : memref<3x32x32xf32, #tpu.memory_space<vmem>>, vector<1x32x32xf32>
    %91 = vector.shape_cast %90 : vector<1x32x32xf32> to vector<32x32xf32>
    %cst_41 = arith.constant dense<0.000000e+00> : vector<32x128xf32>
    %92 = tpu.matmul %91, %89, %cst_41 {dimension_numbers = #tpu.dot_dimension_numbers<[1], [0], [0], [1], [0, 0, 1, 1], [], []>} : vector<32x32xf32>, vector<32x128xf32>, vector<32x128xf32> -> vector<32x128xf32>
    %c0_42 = arith.constant 0 : index
    %c0_43 = arith.constant 0 : index
    %c0_44 = arith.constant 0 : index
    %93 = vector.load %arg4[%c0_42, %c0_43, %c0_44] : memref<1x32x3xf32, #tpu.memory_space<vmem>>, vector<1x32x3xf32>
    %94 = vector.shape_cast %93 : vector<1x32x3xf32> to vector<32x3xf32>
    %cst_45 = arith.constant dense<0.000000e+00> : vector<32x128xf32>
    %95 = tpu.matmul %94, %0, %cst_45 {dimension_numbers = #tpu.dot_dimension_numbers<[1], [1], [0], [0], [0, 0, 1, 0], [], []>} : vector<32x3xf32>, vector<128x3xf32>, vector<32x128xf32> -> vector<32x128xf32>
    %96 = arith.addf %92, %95 : vector<32x128xf32>
    %c2 = arith.constant 2 : index
    %c0_46 = arith.constant 0 : index
    %c0_47 = arith.constant 0 : index
    %97 = vector.load %arg5[%c2, %c0_46, %c0_47] : memref<4x32x1xf32, #tpu.memory_space<vmem>>, vector<1x32x1xf32>
    %98 = vector.shape_cast %97 : vector<1x32x1xf32> to vector<32x1xf32>
    %99 = vector.broadcast %98 : vector<32x1xf32> to vector<32x128xf32>
    %100 = arith.addf %96, %99 : vector<32x128xf32>
    %cst_48 = arith.constant 0.318309873 : f32
    %101 = vector.broadcast %cst_48 : f32 to vector<32x128xf32>
    %102 = arith.mulf %100, %101 : vector<32x128xf32>
    %103 = math.roundeven %102 : vector<32x128xf32>
    %cst_49 = arith.constant 3.140625 : f32
    %104 = vector.broadcast %cst_49 : f32 to vector<32x128xf32>
    %105 = arith.mulf %103, %104 : vector<32x128xf32>
    %106 = arith.subf %100, %105 : vector<32x128xf32>
    %cst_50 = arith.constant 9.67653584E-4 : f32
    %107 = vector.broadcast %cst_50 : f32 to vector<32x128xf32>
    %108 = arith.mulf %103, %107 : vector<32x128xf32>
    %109 = arith.subf %106, %108 : vector<32x128xf32>
    %110 = arith.mulf %109, %109 : vector<32x128xf32>
    %cst_51 = arith.constant -2.50521079E-8 : f32
    %111 = vector.broadcast %cst_51 : f32 to vector<32x128xf32>
    %112 = arith.mulf %111, %110 : vector<32x128xf32>
    %cst_52 = arith.constant 2.75573188E-6 : f32
    %113 = vector.broadcast %cst_52 : f32 to vector<32x128xf32>
    %114 = arith.addf %112, %113 : vector<32x128xf32>
    %115 = arith.mulf %114, %110 : vector<32x128xf32>
    %cst_53 = arith.constant -1.98412701E-4 : f32
    %116 = vector.broadcast %cst_53 : f32 to vector<32x128xf32>
    %117 = arith.addf %115, %116 : vector<32x128xf32>
    %118 = arith.mulf %117, %110 : vector<32x128xf32>
    %cst_54 = arith.constant 0.00833333377 : f32
    %119 = vector.broadcast %cst_54 : f32 to vector<32x128xf32>
    %120 = arith.addf %118, %119 : vector<32x128xf32>
    %121 = arith.mulf %120, %110 : vector<32x128xf32>
    %cst_55 = arith.constant -0.166666672 : f32
    %122 = vector.broadcast %cst_55 : f32 to vector<32x128xf32>
    %123 = arith.addf %121, %122 : vector<32x128xf32>
    %124 = arith.mulf %123, %110 : vector<32x128xf32>
    %cst_56 = arith.constant 1.000000e+00 : f32
    %125 = vector.broadcast %cst_56 : f32 to vector<32x128xf32>
    %126 = arith.addf %124, %125 : vector<32x128xf32>
    %127 = arith.mulf %126, %109 : vector<32x128xf32>
    %cst_57 = arith.constant 5.000000e-01 : f32
    %128 = vector.broadcast %cst_57 : f32 to vector<32x128xf32>
    %129 = arith.mulf %103, %128 : vector<32x128xf32>
    %130 = math.floor %129 : vector<32x128xf32>
    %cst_58 = arith.constant 2.000000e+00 : f32
    %131 = vector.broadcast %cst_58 : f32 to vector<32x128xf32>
    %132 = arith.mulf %131, %130 : vector<32x128xf32>
    %133 = arith.subf %103, %132 : vector<32x128xf32>
    %cst_59 = arith.constant 2.000000e+00 : f32
    %134 = vector.broadcast %cst_59 : f32 to vector<32x128xf32>
    %135 = arith.mulf %134, %133 : vector<32x128xf32>
    %cst_60 = arith.constant 1.000000e+00 : f32
    %136 = vector.broadcast %cst_60 : f32 to vector<32x128xf32>
    %137 = arith.subf %136, %135 : vector<32x128xf32>
    %138 = arith.mulf %127, %137 : vector<32x128xf32>
    %c2_61 = arith.constant 2 : index
    %c0_62 = arith.constant 0 : index
    %c0_63 = arith.constant 0 : index
    %139 = vector.load %arg3[%c2_61, %c0_62, %c0_63] : memref<3x32x32xf32, #tpu.memory_space<vmem>>, vector<1x32x32xf32>
    %140 = vector.shape_cast %139 : vector<1x32x32xf32> to vector<32x32xf32>
    %cst_64 = arith.constant dense<0.000000e+00> : vector<32x128xf32>
    %141 = tpu.matmul %140, %138, %cst_64 {dimension_numbers = #tpu.dot_dimension_numbers<[1], [0], [0], [1], [0, 0, 1, 1], [], []>} : vector<32x32xf32>, vector<32x128xf32>, vector<32x128xf32> -> vector<32x128xf32>
    %c3 = arith.constant 3 : index
    %c0_65 = arith.constant 0 : index
    %c0_66 = arith.constant 0 : index
    %142 = vector.load %arg5[%c3, %c0_65, %c0_66] : memref<4x32x1xf32, #tpu.memory_space<vmem>>, vector<1x32x1xf32>
    %143 = vector.shape_cast %142 : vector<1x32x1xf32> to vector<32x1xf32>
    %144 = vector.broadcast %143 : vector<32x1xf32> to vector<32x128xf32>
    %145 = arith.addf %141, %144 : vector<32x128xf32>
    %cst_67 = arith.constant 0.318309873 : f32
    %146 = vector.broadcast %cst_67 : f32 to vector<32x128xf32>
    %147 = arith.mulf %145, %146 : vector<32x128xf32>
    %148 = math.roundeven %147 : vector<32x128xf32>
    %cst_68 = arith.constant 3.140625 : f32
    %149 = vector.broadcast %cst_68 : f32 to vector<32x128xf32>
    %150 = arith.mulf %148, %149 : vector<32x128xf32>
    %151 = arith.subf %145, %150 : vector<32x128xf32>
    %cst_69 = arith.constant 9.67653584E-4 : f32
    %152 = vector.broadcast %cst_69 : f32 to vector<32x128xf32>
    %153 = arith.mulf %148, %152 : vector<32x128xf32>
    %154 = arith.subf %151, %153 : vector<32x128xf32>
    %155 = arith.mulf %154, %154 : vector<32x128xf32>
    %cst_70 = arith.constant -2.50521079E-8 : f32
    %156 = vector.broadcast %cst_70 : f32 to vector<32x128xf32>
    %157 = arith.mulf %156, %155 : vector<32x128xf32>
    %cst_71 = arith.constant 2.75573188E-6 : f32
    %158 = vector.broadcast %cst_71 : f32 to vector<32x128xf32>
    %159 = arith.addf %157, %158 : vector<32x128xf32>
    %160 = arith.mulf %159, %155 : vector<32x128xf32>
    %cst_72 = arith.constant -1.98412701E-4 : f32
    %161 = vector.broadcast %cst_72 : f32 to vector<32x128xf32>
    %162 = arith.addf %160, %161 : vector<32x128xf32>
    %163 = arith.mulf %162, %155 : vector<32x128xf32>
    %cst_73 = arith.constant 0.00833333377 : f32
    %164 = vector.broadcast %cst_73 : f32 to vector<32x128xf32>
    %165 = arith.addf %163, %164 : vector<32x128xf32>
    %166 = arith.mulf %165, %155 : vector<32x128xf32>
    %cst_74 = arith.constant -0.166666672 : f32
    %167 = vector.broadcast %cst_74 : f32 to vector<32x128xf32>
    %168 = arith.addf %166, %167 : vector<32x128xf32>
    %169 = arith.mulf %168, %155 : vector<32x128xf32>
    %cst_75 = arith.constant 1.000000e+00 : f32
    %170 = vector.broadcast %cst_75 : f32 to vector<32x128xf32>
    %171 = arith.addf %169, %170 : vector<32x128xf32>
    %172 = arith.mulf %171, %154 : vector<32x128xf32>
    %cst_76 = arith.constant 5.000000e-01 : f32
    %173 = vector.broadcast %cst_76 : f32 to vector<32x128xf32>
    %174 = arith.mulf %148, %173 : vector<32x128xf32>
    %175 = math.floor %174 : vector<32x128xf32>
    %cst_77 = arith.constant 2.000000e+00 : f32
    %176 = vector.broadcast %cst_77 : f32 to vector<32x128xf32>
    %177 = arith.mulf %176, %175 : vector<32x128xf32>
    %178 = arith.subf %148, %177 : vector<32x128xf32>
    %cst_78 = arith.constant 2.000000e+00 : f32
    %179 = vector.broadcast %cst_78 : f32 to vector<32x128xf32>
    %180 = arith.mulf %179, %178 : vector<32x128xf32>
    %cst_79 = arith.constant 1.000000e+00 : f32
    %181 = vector.broadcast %cst_79 : f32 to vector<32x128xf32>
    %182 = arith.subf %181, %180 : vector<32x128xf32>
    %183 = arith.mulf %172, %182 : vector<32x128xf32>
    %c0_80 = arith.constant 0 : index
    %c0_81 = arith.constant 0 : index
    %184 = vector.load %arg6[%c0_80, %c0_81] : memref<4x32xf32, #tpu.memory_space<vmem>>, vector<4x32xf32>
    %cst_82 = arith.constant dense<0.000000e+00> : vector<4x128xf32>
    %185 = tpu.matmul %184, %183, %cst_82 {dimension_numbers = #tpu.dot_dimension_numbers<[1], [0], [0], [1], [0, 0, 1, 1], [], []>} : vector<4x32xf32>, vector<32x128xf32>, vector<4x128xf32> -> vector<4x128xf32>
    %c0_83 = arith.constant 0 : index
    %c0_84 = arith.constant 0 : index
    %186 = vector.load %arg7[%c0_83, %c0_84] : memref<4x1xf32, #tpu.memory_space<vmem>>, vector<4x1xf32>
    %187 = vector.broadcast %186 : vector<4x1xf32> to vector<4x128xf32>
    %188 = arith.addf %185, %187 : vector<4x128xf32>
    %c0_85 = arith.constant 0 : index
    %c0_86 = arith.constant 0 : index
    %189 = vector.load %arg8[%c0_85, %c0_86] : memref<4x128xf32, #tpu.memory_space<vmem>>, vector<4x128xf32>
    tpu.vector_store %arg8[%c0_85, %c0_86], %188 {strides = array<i32>} : memref<4x128xf32, #tpu.memory_space<vmem>>, vector<4x128xf32>,
    return
  }
  func.func @transform_0(%arg0: i32) -> (i32, i32) {
    %c0_i32 = arith.constant 0 : i32
    %c0_i32_0 = arith.constant 0 : i32
    return %arg0, %c0_i32 : i32, i32
  }
  func.func @transform_1(%arg0: i32) -> (i32, i32) {
    %c0_i32 = arith.constant 0 : i32
    %c0_i32_0 = arith.constant 0 : i32
    %c0_i32_1 = arith.constant 0 : i32
    return %c0_i32, %c0_i32_0 : i32, i32
  }
  func.func @transform_2(%arg0: i32) -> (i32, i32, i32) {
    %c0_i32 = arith.constant 0 : i32
    %c0_i32_0 = arith.constant 0 : i32
    %c0_i32_1 = arith.constant 0 : i32
    %c0_i32_2 = arith.constant 0 : i32
    return %c0_i32, %c0_i32_0, %c0_i32_1 : i32, i32, i32
  }
  func.func @transform_3(%arg0: i32) -> (i32, i32, i32) {
    %c0_i32 = arith.constant 0 : i32
    %c0_i32_0 = arith.constant 0 : i32
    %c0_i32_1 = arith.constant 0 : i32
    %c0_i32_2 = arith.constant 0 : i32
    return %c0_i32, %c0_i32_0, %c0_i32_1 : i32, i32, i32
  }
  func.func @transform_4(%arg0: i32) -> (i32, i32, i32) {
    %c0_i32 = arith.constant 0 : i32
    %c0_i32_0 = arith.constant 0 : i32
    %c0_i32_1 = arith.constant 0 : i32
    %c0_i32_2 = arith.constant 0 : i32
    return %c0_i32, %c0_i32_0, %c0_i32_1 : i32, i32, i32
  }
  func.func @transform_5(%arg0: i32) -> (i32, i32) {
    %c0_i32 = arith.constant 0 : i32
    %c0_i32_0 = arith.constant 0 : i32
    %c0_i32_1 = arith.constant 0 : i32
    return %c0_i32, %c0_i32_0 : i32, i32
  }
  func.func @transform_6(%arg0: i32) -> (i32, i32) {
    %c0_i32 = arith.constant 0 : i32
    %c0_i32_0 = arith.constant 0 : i32
    %c0_i32_1 = arith.constant 0 : i32
    return %c0_i32, %c0_i32_0 : i32, i32
  }
  func.func @transform_7(%arg0: i32) -> (i32, i32) {
    %c0_i32 = arith.constant 0 : i32
    %c0_i32_0 = arith.constant 0 : i32
    return %c0_i32, %arg0 : i32, i32
  }
}

</mosaic_0001>

<llo_original>
// kernel: tpu_custom_call.1
$region0: #{tpu_custom_call.1}
  #allocation0 [shape = 'u32[]', space=smem, size = 0x4, offset = 0x4, fixed_abs, tag = 'smem constant byte address 0x4 - core index']
  #allocation1 [shape = 'u32[72,128]{1,0:T(1,128)}', space=vmem, size = 0x9000, scoped, tag = 'internal scratch']
  %s0 = inlined_call_operand.vmem [shape: f32[1000,3], index: 0, kind: input, shape index: {}]
  %s1 = inlined_call_operand.vmem [shape: f32[32,3], index: 1, kind: input, shape index: {}]
  %s2 = inlined_call_operand.vmem [shape: f32[3,32,32], index: 2, kind: input, shape index: {}]
  %s3 = inlined_call_operand.vmem [shape: f32[1,32,3], index: 3, kind: input, shape index: {}]
  %s4 = inlined_call_operand.vmem [shape: f32[4,32,1], index: 4, kind: input, shape index: {}]
  %s5 = inlined_call_operand.vmem [shape: f32[4,32], index: 5, kind: input, shape index: {}]
  %s6 = inlined_call_operand.vmem [shape: f32[4,1], index: 6, kind: input, shape index: {}]
  %s7 = inlined_call_operand.hbm [shape: f32[4,1000], index: 7, kind: output, shape index: {}]
  %s8 = sld [smem:[#allocation0]]
  $region61: #{tpu_custom_call.1} parent=0
    _
  %s10 = ssub.s32 1, %s8
  %s11 = scalar_select 0, %s10, %s8
  $region1: #{tpu_custom_call.1} parent=0
    #allocation2 [shape = 'u8[4096]{0}', space=vmem, size = 0x1000, scoped, tag = 'output window, operand 0']
    #allocation3 [shape = 's32[2]{0}', space=sflag, size = 0x8, scoped, tag = 'scoped memory for tpu_custom_call.1']
    %12 = vsyncpa [#allocation3], 0
    %s13 = scalar_lea.sflag [#allocation3], 1
    %14 = vsyncpa %s13, 0
    loop: start=0, step=1, limit=10
    $region2: #{tpu_custom_call.1} parent=1 // loop_pre_header
      _
    $region3: #{tpu_custom_call.1} parent=1 // loop_header
      %s16 = sphi 0, %s20
      %p17 = scmp.ge.s32.totalorder %s16, 10
      %s26 = sphi 0, %s28
      %s29 = sphi 0, %s26
      %s30 = sphi 0, %s29
      %s46 = sphi 0, %s30
      %s50 = sphi 0, %s50
      %s52 = sphi 0, %s50
      %s53 = sphi 0, %s52
      %s67 = sphi 0, %s53
      %s71 = sphi 0, %s71
      %s73 = sphi 0, %s71
      %s74 = sphi 0, %s73
      %s88 = sphi 0, %s74
      %s92 = sphi 0, %s92
      %s94 = sphi 0, %s92
      %s95 = sphi 0, %s94
      %s109 = sphi 0, %s95
      %s113 = sphi 0, %s113
      %s115 = sphi 0, %s113
      %s116 = sphi 0, %s115
      %s130 = sphi 0, %s116
      %s134 = sphi 0, %s134
      %s136 = sphi 0, %s134
      %s137 = sphi 0, %s136
      %s151 = sphi 0, %s137
      %s155 = sphi 0, %s155
      %s157 = sphi 0, %s155
      %s158 = sphi 0, %s157
      %s172 = sphi 0, %s158
      %s178 = sphi 0, %s180
      %s181 = sphi 0, %s178
      %s182 = sphi 0, %s181
      %s198 = sphi 0, %s182
    $region4: #{tpu_custom_call.1} parent=1 // loop_header_branch
      %19 = sbr.rel (%p17) target = $region8
    $region5: #{tpu_custom_call.1} parent=1 // loop_body
      %s21 = ssub.s32 %s16, 1
      %s22 = ssub.s32 %s16, 2
      %s23 = sadd.s32 %s16, 1
      %s24 = ssub.s32 %s16, %s23
      %p25 = scmp.eq.s32.totalorder %s24, 0
      %s27 = sadd.s32 %s26, 1
      %s28 = scalar_select %p25, %s26, %s27
      %p31 = pneg %p25
      %p32 = scmp.eq.s32.totalorder %s16, 7
      %p33 = por %p31, %p32
      %p34 = scmp.ne.s32.totalorder %s26, %s29
      %p35 = scmp.eq.s32.totalorder %s16, 0
      %p36 = por %p34, %p35
      %p37 = scmp.ne.s32.totalorder %s26, %s29
      %p38 = scmp.eq.s32.totalorder %s21, 7
      %p39 = por %p37, %p38
      %p40 = scmp.ne.s32.totalorder %s29, %s30
      %p41 = scmp.eq.s32.totalorder %s21, 0
      %p42 = por %p40, %p41
      %p43 = scmp.ne.s32.totalorder %s29, %s30
      %p44 = scmp.eq.s32.totalorder %s22, 7
      %p45 = por %p43, %p44
      %p47 = scmp.ne.s32.totalorder %s30, %s46
      %p48 = scmp.eq.s32.totalorder %s22, 0
      %p49 = por %p47, %p48
      %s51 = sadd.s32 %s50, 1
      %p54 = scmp.eq.s32.totalorder %s16, 7
      %p55 = scmp.ne.s32.totalorder %s50, %s52
      %p56 = scmp.eq.s32.totalorder %s16, 0
      %p57 = por %p55, %p56
      %p58 = scmp.ne.s32.totalorder %s50, %s52
      %p59 = scmp.eq.s32.totalorder %s21, 7
      %p60 = por %p58, %p59
      %p61 = scmp.ne.s32.totalorder %s52, %s53
      %p62 = scmp.eq.s32.totalorder %s21, 0
      %p63 = por %p61, %p62
      %p64 = scmp.ne.s32.totalorder %s52, %s53
      %p65 = scmp.eq.s32.totalorder %s22, 7
      %p66 = por %p64, %p65
      %p68 = scmp.ne.s32.totalorder %s53, %s67
      %p69 = scmp.eq.s32.totalorder %s22, 0
      %p70 = por %p68, %p69
      %s72 = sadd.s32 %s71, 1
      %p75 = scmp.eq.s32.totalorder %s16, 7
      %p76 = scmp.ne.s32.totalorder %s71, %s73
      %p77 = scmp.eq.s32.totalorder %s16, 0
      %p78 = por %p76, %p77
      %p79 = scmp.ne.s32.totalorder %s71, %s73
      %p80 = scmp.eq.s32.totalorder %s21, 7
      %p81 = por %p79, %p80
      %p82 = scmp.ne.s32.totalorder %s73, %s74
      %p83 = scmp.eq.s32.totalorder %s21, 0
      %p84 = por %p82, %p83
      %p85 = scmp.ne.s32.totalorder %s73, %s74
      %p86 = scmp.eq.s32.totalorder %s22, 7
      %p87 = por %p85, %p86
      %p89 = scmp.ne.s32.totalorder %s74, %s88
      %p90 = scmp.eq.s32.totalorder %s22, 0
      %p91 = por %p89, %p90
      %s93 = sadd.s32 %s92, 1
      %p96 = scmp.eq.s32.totalorder %s16, 7
      %p97 = scmp.ne.s32.totalorder %s92, %s94
      %p98 = scmp.eq.s32.totalorder %s16, 0
      %p99 = por %p97, %p98
      %p100 = scmp.ne.s32.totalorder %s92, %s94
      %p101 = scmp.eq.s32.totalorder %s21, 7
      %p102 = por %p100, %p101
      %p103 = scmp.ne.s32.totalorder %s94, %s95
      %p104 = scmp.eq.s32.totalorder %s21, 0
      %p105 = por %p103, %p104
      %p106 = scmp.ne.s32.totalorder %s94, %s95
      %p107 = scmp.eq.s32.totalorder %s22, 7
      %p108 = por %p106, %p107
      %p110 = scmp.ne.s32.totalorder %s95, %s109
      %p111 = scmp.eq.s32.totalorder %s22, 0
      %p112 = por %p110, %p111
      %s114 = sadd.s32 %s113, 1
      %p117 = scmp.eq.s32.totalorder %s16, 7
      %p118 = scmp.ne.s32.totalorder %s113, %s115
      %p119 = scmp.eq.s32.totalorder %s16, 0
      %p120 = por %p118, %p119
      %p121 = scmp.ne.s32.totalorder %s113, %s115
      %p122 = scmp.eq.s32.totalorder %s21, 7
      %p123 = por %p121, %p122
      %p124 = scmp.ne.s32.totalorder %s115, %s116
      %p125 = scmp.eq.s32.totalorder %s21, 0
      %p126 = por %p124, %p125
      %p127 = scmp.ne.s32.totalorder %s115, %s116
      %p128 = scmp.eq.s32.totalorder %s22, 7
      %p129 = por %p127, %p128
      %p131 = scmp.ne.s32.totalorder %s116, %s130
      %p132 = scmp.eq.s32.totalorder %s22, 0
      %p133 = por %p131, %p132
      %s135 = sadd.s32 %s134, 1
      %p138 = scmp.eq.s32.totalorder %s16, 7
      %p139 = scmp.ne.s32.totalorder %s134, %s136
      %p140 = scmp.eq.s32.totalorder %s16, 0
      %p141 = por %p139, %p140
      %p142 = scmp.ne.s32.totalorder %s134, %s136
      %p143 = scmp.eq.s32.totalorder %s21, 7
      %p144 = por %p142, %p143
      %p145 = scmp.ne.s32.totalorder %s136, %s137
      %p146 = scmp.eq.s32.totalorder %s21, 0
      %p147 = por %p145, %p146
      %p148 = scmp.ne.s32.totalorder %s136, %s137
      %p149 = scmp.eq.s32.totalorder %s22, 7
      %p150 = por %p148, %p149
      %p152 = scmp.ne.s32.totalorder %s137, %s151
      %p153 = scmp.eq.s32.totalorder %s22, 0
      %p154 = por %p152, %p153
      %s156 = sadd.s32 %s155, 1
      %p159 = scmp.eq.s32.totalorder %s16, 7
      %p160 = scmp.ne.s32.totalorder %s155, %s157
      %p161 = scmp.eq.s32.totalorder %s16, 0
      %p162 = por %p160, %p161
      %p163 = scmp.ne.s32.totalorder %s155, %s157
      %p164 = scmp.eq.s32.totalorder %s21, 7
      %p165 = por %p163, %p164
      %p166 = scmp.ne.s32.totalorder %s157, %s158
      %p167 = scmp.eq.s32.totalorder %s21, 0
      %p168 = por %p166, %p167
      %p169 = scmp.ne.s32.totalorder %s157, %s158
      %p170 = scmp.eq.s32.totalorder %s22, 7
      %p171 = por %p169, %p170
      %p173 = scmp.ne.s32.totalorder %s158, %s172
      %p174 = scmp.eq.s32.totalorder %s22, 0
      %p175 = por %p173, %p174
      %s176 = ssub.s32 %s16, %s23
      %p177 = scmp.eq.s32.totalorder %s176, 0
      %s179 = sadd.s32 %s178, 1
      %s180 = scalar_select %p177, %s178, %s179
      %p183 = pneg %p177
      %p184 = scmp.eq.s32.totalorder %s16, 7
      %p185 = por %p183, %p184
      %p186 = scmp.ne.s32.totalorder %s178, %s181
      %p187 = scmp.eq.s32.totalorder %s16, 0
      %p188 = por %p186, %p187
      %p189 = scmp.ne.s32.totalorder %s178, %s181
      %p190 = scmp.eq.s32.totalorder %s21, 7
      %p191 = por %p189, %p190
      %p192 = scmp.ne.s32.totalorder %s181, %s182
      %p193 = scmp.eq.s32.totalorder %s21, 0
      %p194 = por %p192, %p193
      %p195 = scmp.ne.s32.totalorder %s181, %s182
      %p196 = scmp.eq.s32.totalorder %s22, 7
      %p197 = por %p195, %p196
      %p199 = scmp.ne.s32.totalorder %s182, %s198
      %p200 = scmp.eq.s32.totalorder %s22, 0
      %p201 = por %p199, %p200
      %p202 = scmp.le.s32.totalorder 1, %s16
      %p203 = scmp.lt.s32.totalorder %s16, 9
      %p204 = pnand %p202, %p203
      %p205 = pneg %p204
      // Predicated region
      $region9: #{tpu_custom_call.1} parent=5 // pred_check
        _
      $region10: #{tpu_custom_call.1} parent=5 // pred_check_branch
        %207 = sbr.rel (%p204) target = $region12
      $region11: #{tpu_custom_call.1} parent=5 // pred_region
        %s208 = ssub.s32 %s16, 1
        // Predicated region
        $region13: #{tpu_custom_call.1} parent=11 // pred_check
          %p209 = pneg %p63
        $region14: #{tpu_custom_call.1} parent=11 // pred_check_branch
          %211 = sbr.rel (%p209) target = $region16
        $region15: #{tpu_custom_call.1} parent=11 // pred_region
          _
        $region16: #{tpu_custom_call.1} parent=11 // pred_fallthru
          _
        // Predicated region
        $region17: #{tpu_custom_call.1} parent=11 // pred_check
          %p212 = pneg %p84
        $region18: #{tpu_custom_call.1} parent=11 // pred_check_branch
          %214 = sbr.rel (%p212) target = $region20
        $region19: #{tpu_custom_call.1} parent=11 // pred_region
          _
        $region20: #{tpu_custom_call.1} parent=11 // pred_fallthru
          _
        // Predicated region
        $region21: #{tpu_custom_call.1} parent=11 // pred_check
          %p215 = pneg %p105
        $region22: #{tpu_custom_call.1} parent=11 // pred_check_branch
          %217 = sbr.rel (%p215) target = $region24
        $region23: #{tpu_custom_call.1} parent=11 // pred_region
          _
        $region24: #{tpu_custom_call.1} parent=11 // pred_fallthru
          _
        // Predicated region
        $region25: #{tpu_custom_call.1} parent=11 // pred_check
          %p218 = pneg %p126
        $region26: #{tpu_custom_call.1} parent=11 // pred_check_branch
          %220 = sbr.rel (%p218) target = $region28
        $region27: #{tpu_custom_call.1} parent=11 // pred_region
          _
        $region28: #{tpu_custom_call.1} parent=11 // pred_fallthru
          _
        // Predicated region
        $region29: #{tpu_custom_call.1} parent=11 // pred_check
          %p221 = pneg %p147
        $region30: #{tpu_custom_call.1} parent=11 // pred_check_branch
          %223 = sbr.rel (%p221) target = $region32
        $region31: #{tpu_custom_call.1} parent=11 // pred_region
          _
        $region32: #{tpu_custom_call.1} parent=11 // pred_fallthru
          _
        // Predicated region
        $region33: #{tpu_custom_call.1} parent=11 // pred_check
          %p224 = pneg %p168
        $region34: #{tpu_custom_call.1} parent=11 // pred_check_branch
          %226 = sbr.rel (%p224) target = $region36
        $region35: #{tpu_custom_call.1} parent=11 // pred_region
          _
        $region36: #{tpu_custom_call.1} parent=11 // pred_fallthru
          _
      $region12: #{tpu_custom_call.1} parent=5 // pred_fallthru
        _
      %p227 = scmp.lt.s32.totalorder %s16, 8
      // Predicated region
      $region37: #{tpu_custom_call.1} parent=5 // pred_check
        %p228 = pneg %p227
      $region38: #{tpu_custom_call.1} parent=5 // pred_check_branch
        %230 = sbr.rel (%p228) target = $region40
      $region39: #{tpu_custom_call.1} parent=5 // pred_region
        // Predicated region
        $region41: #{tpu_custom_call.1} parent=39 // pred_check
          %p231 = pneg %p36
        $region42: #{tpu_custom_call.1} parent=39 // pred_check_branch
          %233 = sbr.rel (%p231) target = $region44
        $region43: #{tpu_custom_call.1} parent=39 // pred_region
          %s234 = smul.u32 16, %s16
          %s235 = ssub.s32 125, %s234
          %p236 = scmp.lt.s32.totalorder %s235, 16
          %s237 = scalar_select %p236, %s235, 16
          %s238 = smul.u32 8, %s237
          %p239 = scmp.lt.s32.totalorder %s234, 124
          %s240 = scalar_select %p239, %s234, 124
          %s241 = smul.addr %s240, 8
          %s242 = scalar_lea.vmem %s0, %s241
          %s243 = smul.u32 16, %s16
          %s244 = ssub.s32 125, %s243
          %p245 = scmp.lt.s32.totalorder %s244, 16
          %s246 = scalar_select %p245, %s244, 16
          %s247 = smul.u32 8, %s246
        $region44: #{tpu_custom_call.1} parent=39 // pred_fallthru
          _
      $region40: #{tpu_custom_call.1} parent=5 // pred_fallthru
        _
      %p248 = scmp.le.s32.totalorder 1, %s16
      %p249 = scmp.lt.s32.totalorder %s16, 9
      %p250 = pnand %p248, %p249
      %p251 = pneg %p250
      // Predicated region
      $region45: #{tpu_custom_call.1} parent=5 // pred_check
        _
      $region46: #{tpu_custom_call.1} parent=5 // pred_check_branch
        %253 = sbr.rel (%p250) target = $region48
      $region47: #{tpu_custom_call.1} parent=5 // pred_region
        %s254 = ssub.s32 %s16, 1
        %s255 = smul.u32 16, %s21
        %s256 = ssub.s32 125, %s255
        %p257 = scmp.lt.s32.totalorder %s256, 16
        %s258 = scalar_select %p257, %s256, 16
        %s259 = smul.u32 8, %s258
        %p260 = scmp.lt.s32.totalorder %s255, 124
        %s261 = scalar_select %p260, %s255, 124
        %s262 = smul.addr %s261, 8
        %s263 = scalar_lea.vmem %s0, %s262
        %p264 = pneg %p42
        %p265 = pneg %p39
        %p266 = pneg %p63
        %p267 = pneg %p60
        %p268 = pneg %p84
        %p269 = pneg %p81
        %p270 = pneg %p105
        %p271 = pneg %p102
        %p272 = pneg %p126
        %p273 = pneg %p123
        %p274 = pneg %p147
        %p275 = pneg %p144
        %p276 = pneg %p168
        %p277 = pneg %p165
        %p278 = pneg %p194
        %p279 = pneg %p191
        %s280 = sand.u32 %s181, 1
        %s281 = scalar_lea.sflag [#allocation3], %s280
        %s282 = sand.u32 %s181, 1
        %s283 = smul.addr %s282, 4
        %s284 = scalar_lea.vmem [#allocation2], %s283
        %s285 = smul.u32 16, %s21
        %s286 = ssub.s32 125, %s285
        %p287 = scmp.lt.s32.totalorder %s286, 16
        %s288 = scalar_select %p287, %s286, 16
        %s289 = smul.u32 8, %s288
        %p290 = scmp.lt.s32.totalorder %s285, 124
        %s291 = scalar_select %p290, %s285, 124
        %s292 = smul.addr %s291, 8
        %s293 = scalar_lea.vmem %s0, %s292
        %s294 = smul.u32 16, %s21
        %s295 = ssub.s32 125, %s294
        %p296 = scmp.lt.s32.totalorder %s295, 16
        %s297 = scalar_select %p296, %s295, 16
        %s298 = smul.u32 8, %s297
        %v299 = vld [vmem:[%s293] sm:$0xff]
        %v300 = vld [vmem:[%s293 + $0x8] sm:$0xff]
        %v301 = vld [vmem:[%s293 + $0x10] sm:$0xff]
        %v302 = vld [vmem:[%s293 + $0x18] sm:$0xff]
        %v303 = vld [vmem:[%s293 + $0x20] sm:$0xff]
        %v304 = vld [vmem:[%s293 + $0x28] sm:$0xff]
        %v305 = vld [vmem:[%s293 + $0x30] sm:$0xff]
        %v306 = vld [vmem:[%s293 + $0x38] sm:$0xff]
        %v307 = vld [vmem:[%s293 + $0x40] sm:$0xff]
        %v308 = vld [vmem:[%s293 + $0x48] sm:$0xff]
        %v309 = vld [vmem:[%s293 + $0x50] sm:$0xff]
        %v310 = vld [vmem:[%s293 + $0x58] sm:$0xff]
        %v311 = vld [vmem:[%s293 + $0x60] sm:$0xff]
        %v312 = vld [vmem:[%s293 + $0x68] sm:$0xff]
        %v313 = vld [vmem:[%s293 + $0x70] sm:$0xff]
        %v314 = vld [vmem:[%s293 + $0x78] sm:$0xff]
        %v315 = vld [vmem:[%s1] sm:$0xff]
        %v316 = vld [vmem:[%s1 + $0x8] sm:$0xff]
        %v317 = vld [vmem:[%s1 + $0x10] sm:$0xff]
        %v318 = vld [vmem:[%s1 + $0x18] sm:$0xff]
        %v319 = vld [vmem:[%s4] sm:$0xff]
        %v320 = vld [vmem:[%s4 + $0x8] sm:$0xff]
        %v321 = vld [vmem:[%s4 + $0x10] sm:$0xff]
        %v322 = vld [vmem:[%s4 + $0x18] sm:$0xff]
        %324 = vset.pattern.permute.xlu0 0
        %325 = vperm.xlu0 %324, %v319
        %v326 = vpop.permute.xlu0 %325
        %329 = vset.pattern.permute.xlu0 0
        %330 = vperm.xlu0 %329, %v320
        %v331 = vpop.permute.xlu0 %330
        %334 = vset.pattern.permute.xlu0 0
        %335 = vperm.xlu0 %334, %v321
        %v336 = vpop.permute.xlu0 %335
        %339 = vset.pattern.permute.xlu0 0
        %340 = vperm.xlu0 %339, %v322
        %v341 = vpop.permute.xlu0 %340
        %vm343 = vcmask 23552
        %v345 = vsel %vm343, %v315, 0
        %v348 = vsel %vm343, %v316, 0
        %v351 = vsel %vm343, %v317, 0
        %v354 = vsel %vm343, %v318, 0
        %v357 = vsel %vm343, %v299, 0
        %v360 = vsel %vm343, %v300, 0
        %v363 = vsel %vm343, %v301, 0
        %v366 = vsel %vm343, %v302, 0
        %v369 = vsel %vm343, %v303, 0
        %v372 = vsel %vm343, %v304, 0
        %v375 = vsel %vm343, %v305, 0
        %v378 = vsel %vm343, %v306, 0
        %v381 = vsel %vm343, %v307, 0
        %v384 = vsel %vm343, %v308, 0
        %v387 = vsel %vm343, %v309, 0
        %v390 = vsel %vm343, %v310, 0
        %v393 = vsel %vm343, %v311, 0
        %v396 = vsel %vm343, %v312, 0
        %v399 = vsel %vm343, %v313, 0
        %v402 = vsel %vm343, %v314, 0
        %404 = vmatpush.xpose.msra.mxu0 %v402
        %405 = vmatpush.xpose.msra.mxu0 %v399
        %406 = vmatpush.xpose.msra.mxu0 %v396
        %407 = vmatpush.xpose.msra.mxu0 %v393
        %408 = vmatpush.xpose.msra.mxu0 %v390
        %409 = vmatpush.xpose.msra.mxu0 %v387
        %410 = vmatpush.xpose.msra.mxu0 %v384
        %411 = vmatpush.xpose.msra.mxu0 %v381
        %412 = vmatpush.xpose.msra.mxu0 %v378
        %413 = vmatpush.xpose.msra.mxu0 %v375
        %414 = vmatpush.xpose.msra.mxu0 %v372
        %415 = vmatpush.xpose.msra.mxu0 %v369
        %416 = vmatpush.xpose.msra.mxu0 %v366
        %417 = vmatpush.xpose.msra.mxu0 %v363
        %418 = vmatpush.xpose.msra.mxu0 %v360
        %419 = vmatpush.xpose.msra.mxu0 %v357
        %420 = vmatmul.f32.gmra.mxu0 %v345
        %v421 = vpop.f32.mrf.mxu0
        %v422 = vadd.f32 %v326, %v421
        %423 = vmatmul.f32.gmra.mxu0 %v348
        %v424 = vpop.f32.mrf.mxu0
        %v425 = vadd.f32 %v331, %v424
        %426 = vmatmul.f32.gmra.mxu0 %v351
        %v427 = vpop.f32.mrf.mxu0
        %v428 = vadd.f32 %v336, %v427
        %429 = vmatmul.f32.gmra.mxu0 %v354
        %v430 = vpop.f32.mrf.mxu0
        %v431 = vadd.f32 %v341, %v430
        %432 = vdwg.mxu0
        %v433 = vmul.f32 %v422, 0.31830987
        %v434 = vmul.f32 %v425, 0.31830987
        %v435 = vmul.f32 %v428, 0.31830987
        %v436 = vmul.f32 %v431, 0.31830987
        %v437 = vround.ne.pseudo %v433
        %v438 = vround.ne.pseudo %v434
        %v439 = vround.ne.pseudo %v435
        %v440 = vround.ne.pseudo %v436
        %v441 = vmul.f32 %v437, 3.140625
        %v442 = vmul.f32 %v438, 3.140625
        %v443 = vmul.f32 %v439, 3.140625
        %v444 = vmul.f32 %v440, 3.140625
        %v445 = vsub.f32 %v422, %v441
        %v446 = vsub.f32 %v425, %v442
        %v447 = vsub.f32 %v428, %v443
        %v448 = vsub.f32 %v431, %v444
        %v449 = vmul.f32 %v437, 0.0009676536
        %v450 = vmul.f32 %v438, 0.0009676536
        %v451 = vmul.f32 %v439, 0.0009676536
        %v452 = vmul.f32 %v440, 0.0009676536
        %v453 = vsub.f32 %v445, %v449
        %v454 = vsub.f32 %v446, %v450
        %v455 = vsub.f32 %v447, %v451
        %v456 = vsub.f32 %v448, %v452
        %v457 = vmul.f32 %v453, %v453
        %v458 = vmul.f32 %v454, %v454
        %v459 = vmul.f32 %v455, %v455
        %v460 = vmul.f32 %v456, %v456
        %v461 = vmul.f32 %v457, -2.5052108e-08
        %v462 = vmul.f32 %v458, -2.5052108e-08
        %v463 = vmul.f32 %v459, -2.5052108e-08
        %v464 = vmul.f32 %v460, -2.5052108e-08
        %v465 = vadd.f32 %v461, 2.7557319e-06
        %v466 = vadd.f32 %v462, 2.7557319e-06
        %v467 = vadd.f32 %v463, 2.7557319e-06
        %v468 = vadd.f32 %v464, 2.7557319e-06
        %v469 = vmul.f32 %v465, %v457
        %v470 = vmul.f32 %v466, %v458
        %v471 = vmul.f32 %v467, %v459
        %v472 = vmul.f32 %v468, %v460
        %v473 = vadd.f32 %v469, -0.0001984127
        %v474 = vadd.f32 %v470, -0.0001984127
        %v475 = vadd.f32 %v471, -0.0001984127
        %v476 = vadd.f32 %v472, -0.0001984127
        %v477 = vmul.f32 %v473, %v457
        %v478 = vmul.f32 %v474, %v458
        %v479 = vmul.f32 %v475, %v459
        %v480 = vmul.f32 %v476, %v460
        %v481 = vadd.f32 %v477, 0.008333334
        %v482 = vadd.f32 %v478, 0.008333334
        %v483 = vadd.f32 %v479, 0.008333334
        %v484 = vadd.f32 %v480, 0.008333334
        %v485 = vmul.f32 %v481, %v457
        %v486 = vmul.f32 %v482, %v458
        %v487 = vmul.f32 %v483, %v459
        %v488 = vmul.f32 %v484, %v460
        %v489 = vadd.f32 %v485, -0.16666667
        %v490 = vadd.f32 %v486, -0.16666667
        %v491 = vadd.f32 %v487, -0.16666667
        %v492 = vadd.f32 %v488, -0.16666667
        %v493 = vmul.f32 %v489, %v457
        %v494 = vmul.f32 %v490, %v458
        %v495 = vmul.f32 %v491, %v459
        %v496 = vmul.f32 %v492, %v460
        %v497 = vadd.f32 %v493, 1.0
        %v498 = vadd.f32 %v494, 1.0
        %v499 = vadd.f32 %v495, 1.0
        %v500 = vadd.f32 %v496, 1.0
        %v501 = vmul.f32 %v497, %v453
        %v502 = vmul.f32 %v498, %v454
        %v503 = vmul.f32 %v499, %v455
        %v504 = vmul.f32 %v500, %v456
        %v505 = vmul.f32 %v437, 0.5
        %v506 = vmul.f32 %v438, 0.5
        %v507 = vmul.f32 %v439, 0.5
        %v508 = vmul.f32 %v440, 0.5
        %v509 = vfloor.f32 %v505
        %v510 = vfloor.f32 %v506
        %v511 = vfloor.f32 %v507
        %v512 = vfloor.f32 %v508
        %v513 = vmul.f32 %v509, 2.0
        %v514 = vmul.f32 %v510, 2.0
        %v515 = vmul.f32 %v511, 2.0
        %v516 = vmul.f32 %v512, 2.0
        %v517 = vsub.f32 %v437, %v513
        %v518 = vsub.f32 %v438, %v514
        %v519 = vsub.f32 %v439, %v515
        %v520 = vsub.f32 %v440, %v516
        %v521 = vmul.f32 %v517, 2.0
        %v522 = vmul.f32 %v518, 2.0
        %v523 = vmul.f32 %v519, 2.0
        %v524 = vmul.f32 %v520, 2.0
        %v525 = vsub.f32 1.0, %v521
        %v526 = vsub.f32 1.0, %v522
        %v527 = vsub.f32 1.0, %v523
        %v528 = vsub.f32 1.0, %v524
        %v529 = vmul.f32 %v501, %v525
        %v530 = vmul.f32 %v502, %v526
        %v531 = vmul.f32 %v503, %v527
        %v532 = vmul.f32 %v504, %v528
        %v533 = vld [vmem:[%s2] sm:$0xff]
        %v534 = vld [vmem:[%s2 + $0x8] sm:$0xff]
        %v535 = vld [vmem:[%s2 + $0x10] sm:$0xff]
        %v536 = vld [vmem:[%s2 + $0x18] sm:$0xff]
        %s537 = scalar_lea.vmem %s4, 32
        %v538 = vld [vmem:[%s537] sm:$0xff]
        %v539 = vld [vmem:[%s537 + $0x8] sm:$0xff]
        %v540 = vld [vmem:[%s537 + $0x10] sm:$0xff]
        %v541 = vld [vmem:[%s537 + $0x18] sm:$0xff]
        %543 = vset.pattern.permute.xlu0 0
        %544 = vperm.xlu0 %543, %v538
        %v545 = vpop.permute.xlu0 %544
        %548 = vset.pattern.permute.xlu0 0
        %549 = vperm.xlu0 %548, %v539
        %v550 = vpop.permute.xlu0 %549
        %553 = vset.pattern.permute.xlu0 0
        %554 = vperm.xlu0 %553, %v540
        %v555 = vpop.permute.xlu0 %554
        %558 = vset.pattern.permute.xlu0 0
        %559 = vperm.xlu0 %558, %v541
        %v560 = vpop.permute.xlu0 %559
        %vm562 = vcmask 261120
        %v564 = vsel %vm562, %v533, 0
        %v567 = vsel %vm562, %v534, 0
        %v570 = vsel %vm562, %v535, 0
        %v573 = vsel %vm562, %v536, 0
        %575 = vmatpush.msra.mxu0 0.0
        %576 = vmatpush.msra.mxu0 0.0
        %577 = vmatpush.msra.mxu0 0.0
        %578 = vmatpush.msra.mxu0 0.0
        %579 = vmatpush.msra.mxu0 0.0
        %580 = vmatpush.msra.mxu0 0.0
        %581 = vmatpush.msra.mxu0 0.0
        %582 = vmatpush.msra.mxu0 0.0
        %583 = vmatpush.msra.mxu0 0.0
        %584 = vmatpush.msra.mxu0 0.0
        %585 = vmatpush.msra.mxu0 0.0
        %586 = vmatpush.msra.mxu0 0.0
        %587 = vmatpush.msra.mxu0 %v532
        %588 = vmatpush.msra.mxu0 %v531
        %589 = vmatpush.msra.mxu0 %v530
        %590 = vmatpush.msra.mxu0 %v529
        %591 = vmatmul.f32.gmra.mxu0 %v564
        %v592 = vpop.f32.mrf.mxu0
        %v593 = vadd.f32 %v545, %v592
        %594 = vmatmul.f32.gmra.mxu0 %v567
        %v595 = vpop.f32.mrf.mxu0
        %v596 = vadd.f32 %v550, %v595
        %597 = vmatmul.f32.gmra.mxu0 %v570
        %v598 = vpop.f32.mrf.mxu0
        %v599 = vadd.f32 %v555, %v598
        %600 = vmatmul.f32.gmra.mxu0 %v573
        %v601 = vpop.f32.mrf.mxu0
        %v602 = vadd.f32 %v560, %v601
        %603 = vdwg.mxu0
        %v604 = vmul.f32 %v593, 0.31830987
        %v605 = vmul.f32 %v596, 0.31830987
        %v606 = vmul.f32 %v599, 0.31830987
        %v607 = vmul.f32 %v602, 0.31830987
        %v608 = vround.ne.pseudo %v604
        %v609 = vround.ne.pseudo %v605
        %v610 = vround.ne.pseudo %v606
        %v611 = vround.ne.pseudo %v607
        %v612 = vmul.f32 %v608, 3.140625
        %v613 = vmul.f32 %v609, 3.140625
        %v614 = vmul.f32 %v610, 3.140625
        %v615 = vmul.f32 %v611, 3.140625
        %v616 = vsub.f32 %v593, %v612
        %v617 = vsub.f32 %v596, %v613
        %v618 = vsub.f32 %v599, %v614
        %v619 = vsub.f32 %v602, %v615
        %v620 = vmul.f32 %v608, 0.0009676536
        %v621 = vmul.f32 %v609, 0.0009676536
        %v622 = vmul.f32 %v610, 0.0009676536
        %v623 = vmul.f32 %v611, 0.0009676536
        %v624 = vsub.f32 %v616, %v620
        %v625 = vsub.f32 %v617, %v621
        %v626 = vsub.f32 %v618, %v622
        %v627 = vsub.f32 %v619, %v623
        %v628 = vmul.f32 %v624, %v624
        %v629 = vmul.f32 %v625, %v625
        %v630 = vmul.f32 %v626, %v626
        %v631 = vmul.f32 %v627, %v627
        %v632 = vmul.f32 %v628, -2.5052108e-08
        %v633 = vmul.f32 %v629, -2.5052108e-08
        %v634 = vmul.f32 %v630, -2.5052108e-08
        %v635 = vmul.f32 %v631, -2.5052108e-08
        %v636 = vadd.f32 %v632, 2.7557319e-06
        %v637 = vadd.f32 %v633, 2.7557319e-06
        %v638 = vadd.f32 %v634, 2.7557319e-06
        %v639 = vadd.f32 %v635, 2.7557319e-06
        %v640 = vmul.f32 %v636, %v628
        %v641 = vmul.f32 %v637, %v629
        %v642 = vmul.f32 %v638, %v630
        %v643 = vmul.f32 %v639, %v631
        %v644 = vadd.f32 %v640, -0.0001984127
        %v645 = vadd.f32 %v641, -0.0001984127
        %v646 = vadd.f32 %v642, -0.0001984127
        %v647 = vadd.f32 %v643, -0.0001984127
        %v648 = vmul.f32 %v644, %v628
        %v649 = vmul.f32 %v645, %v629
        %v650 = vmul.f32 %v646, %v630
        %v651 = vmul.f32 %v647, %v631
        %v652 = vadd.f32 %v648, 0.008333334
        %v653 = vadd.f32 %v649, 0.008333334
        %v654 = vadd.f32 %v650, 0.008333334
        %v655 = vadd.f32 %v651, 0.008333334
        %v656 = vmul.f32 %v652, %v628
        %v657 = vmul.f32 %v653, %v629
        %v658 = vmul.f32 %v654, %v630
        %v659 = vmul.f32 %v655, %v631
        %v660 = vadd.f32 %v656, -0.16666667
        %v661 = vadd.f32 %v657, -0.16666667
        %v662 = vadd.f32 %v658, -0.16666667
        %v663 = vadd.f32 %v659, -0.16666667
        %v664 = vmul.f32 %v660, %v628
        %v665 = vmul.f32 %v661, %v629
        %v666 = vmul.f32 %v662, %v630
        %v667 = vmul.f32 %v663, %v631
        %v668 = vadd.f32 %v664, 1.0
        %v669 = vadd.f32 %v665, 1.0
        %v670 = vadd.f32 %v666, 1.0
        %v671 = vadd.f32 %v667, 1.0
        %v672 = vmul.f32 %v668, %v624
        %v673 = vmul.f32 %v669, %v625
        %v674 = vmul.f32 %v670, %v626
        %v675 = vmul.f32 %v671, %v627
        %v676 = vmul.f32 %v608, 0.5
        %v677 = vmul.f32 %v609, 0.5
        %v678 = vmul.f32 %v610, 0.5
        %v679 = vmul.f32 %v611, 0.5
        %v680 = vfloor.f32 %v676
        %v681 = vfloor.f32 %v677
        %v682 = vfloor.f32 %v678
        %v683 = vfloor.f32 %v679
        %v684 = vmul.f32 %v680, 2.0
        %v685 = vmul.f32 %v681, 2.0
        %v686 = vmul.f32 %v682, 2.0
        %v687 = vmul.f32 %v683, 2.0
        %v688 = vsub.f32 %v608, %v684
        %v689 = vsub.f32 %v609, %v685
        %v690 = vsub.f32 %v610, %v686
        %v691 = vsub.f32 %v611, %v687
        %v692 = vmul.f32 %v688, 2.0
        %v693 = vmul.f32 %v689, 2.0
        %v694 = vmul.f32 %v690, 2.0
        %v695 = vmul.f32 %v691, 2.0
        %v696 = vsub.f32 1.0, %v692
        %v697 = vsub.f32 1.0, %v693
        %v698 = vsub.f32 1.0, %v694
        %v699 = vsub.f32 1.0, %v695
        %v700 = vmul.f32 %v672, %v696
        %v701 = vmul.f32 %v673, %v697
        %v702 = vmul.f32 %v674, %v698
        %v703 = vmul.f32 %v675, %v699
        %s704 = scalar_lea.vmem %s2, 32
        %v705 = vld [vmem:[%s704] sm:$0xff]
        %v706 = vld [vmem:[%s704 + $0x8] sm:$0xff]
        %v707 = vld [vmem:[%s704 + $0x10] sm:$0xff]
        %v708 = vld [vmem:[%s704 + $0x18] sm:$0xff]
        %v709 = vld [vmem:[%s3] sm:$0xff]
        %v710 = vld [vmem:[%s3 + $0x8] sm:$0xff]
        %v711 = vld [vmem:[%s3 + $0x10] sm:$0xff]
        %v712 = vld [vmem:[%s3 + $0x18] sm:$0xff]
        %v714 = vsel %vm343, %v709, 0
        %v717 = vsel %vm343, %v710, 0
        %v720 = vsel %vm343, %v711, 0
        %v723 = vsel %vm343, %v712, 0
        %725 = vmatpush.xpose.msra.mxu0 %v402
        %726 = vmatpush.xpose.msra.mxu0 %v399
        %727 = vmatpush.xpose.msra.mxu0 %v396
        %728 = vmatpush.xpose.msra.mxu0 %v393
        %729 = vmatpush.xpose.msra.mxu0 %v390
        %730 = vmatpush.xpose.msra.mxu0 %v387
        %731 = vmatpush.xpose.msra.mxu0 %v384
        %732 = vmatpush.xpose.msra.mxu0 %v381
        %733 = vmatpush.xpose.msra.mxu0 %v378
        %734 = vmatpush.xpose.msra.mxu0 %v375
        %735 = vmatpush.xpose.msra.mxu0 %v372
        %736 = vmatpush.xpose.msra.mxu0 %v369
        %737 = vmatpush.xpose.msra.mxu0 %v366
        %738 = vmatpush.xpose.msra.mxu0 %v363
        %739 = vmatpush.xpose.msra.mxu0 %v360
        %740 = vmatpush.xpose.msra.mxu0 %v357
        %741 = vmatmul.f32.gmra.mxu0 %v714
        %v742 = vpop.f32.mrf.mxu0
        %v743 = vadd.f32 0.0, %v742
        %744 = vmatmul.f32.gmra.mxu0 %v717
        %v745 = vpop.f32.mrf.mxu0
        %v746 = vadd.f32 0.0, %v745
        %747 = vmatmul.f32.gmra.mxu0 %v720
        %v748 = vpop.f32.mrf.mxu0
        %v749 = vadd.f32 0.0, %v748
        %750 = vmatmul.f32.gmra.mxu0 %v723
        %v751 = vpop.f32.mrf.mxu0
        %v752 = vadd.f32 0.0, %v751
        %753 = vdwg.mxu0
        %v755 = vsel %vm562, %v705, 0
        %v758 = vsel %vm562, %v706, 0
        %v761 = vsel %vm562, %v707, 0
        %v764 = vsel %vm562, %v708, 0
        %766 = vmatpush.msra.mxu0 0.0
        %767 = vmatpush.msra.mxu0 0.0
        %768 = vmatpush.msra.mxu0 0.0
        %769 = vmatpush.msra.mxu0 0.0
        %770 = vmatpush.msra.mxu0 0.0
        %771 = vmatpush.msra.mxu0 0.0
        %772 = vmatpush.msra.mxu0 0.0
        %773 = vmatpush.msra.mxu0 0.0
        %774 = vmatpush.msra.mxu0 0.0
        %775 = vmatpush.msra.mxu0 0.0
        %776 = vmatpush.msra.mxu0 0.0
        %777 = vmatpush.msra.mxu0 0.0
        %778 = vmatpush.msra.mxu0 %v703
        %779 = vmatpush.msra.mxu0 %v702
        %780 = vmatpush.msra.mxu0 %v701
        %781 = vmatpush.msra.mxu0 %v700
        %782 = vmatmul.f32.gmra.mxu0 %v755
        %v783 = vpop.f32.mrf.mxu0
        %v784 = vadd.f32 %v743, %v783
        %785 = vmatmul.f32.gmra.mxu0 %v758
        %v786 = vpop.f32.mrf.mxu0
        %v787 = vadd.f32 %v746, %v786
        %788 = vmatmul.f32.gmra.mxu0 %v761
        %v789 = vpop.f32.mrf.mxu0
        %v790 = vadd.f32 %v749, %v789
        %791 = vmatmul.f32.gmra.mxu0 %v764
        %v792 = vpop.f32.mrf.mxu0
        %v793 = vadd.f32 %v752, %v792
        %794 = vdwg.mxu0
        %s795 = scalar_lea.vmem %s4, 64
        %v796 = vld [vmem:[%s795] sm:$0xff]
        %v797 = vld [vmem:[%s795 + $0x8] sm:$0xff]
        %v798 = vld [vmem:[%s795 + $0x10] sm:$0xff]
        %v799 = vld [vmem:[%s795 + $0x18] sm:$0xff]
        %801 = vset.pattern.permute.xlu0 0
        %802 = vperm.xlu0 %801, %v796
        %v803 = vpop.permute.xlu0 %802
        %806 = vset.pattern.permute.xlu0 0
        %807 = vperm.xlu0 %806, %v797
        %v808 = vpop.permute.xlu0 %807
        %811 = vset.pattern.permute.xlu0 0
        %812 = vperm.xlu0 %811, %v798
        %v813 = vpop.permute.xlu0 %812
        %816 = vset.pattern.permute.xlu0 0
        %817 = vperm.xlu0 %816, %v799
        %v818 = vpop.permute.xlu0 %817
        %v820 = vadd.f32 %v784, %v803
        %v821 = vadd.f32 %v787, %v808
        %v822 = vadd.f32 %v790, %v813
        %v823 = vadd.f32 %v793, %v818
        %v824 = vmul.f32 %v820, 0.31830987
        %v825 = vmul.f32 %v821, 0.31830987
        %v826 = vmul.f32 %v822, 0.31830987
        %v827 = vmul.f32 %v823, 0.31830987
        %v828 = vround.ne.pseudo %v824
        %v829 = vround.ne.pseudo %v825
        %v830 = vround.ne.pseudo %v826
        %v831 = vround.ne.pseudo %v827
        %v832 = vmul.f32 %v828, 3.140625
        %v833 = vmul.f32 %v829, 3.140625
        %v834 = vmul.f32 %v830, 3.140625
        %v835 = vmul.f32 %v831, 3.140625
        %v836 = vsub.f32 %v820, %v832
        %v837 = vsub.f32 %v821, %v833
        %v838 = vsub.f32 %v822, %v834
        %v839 = vsub.f32 %v823, %v835
        %v840 = vmul.f32 %v828, 0.0009676536
        %v841 = vmul.f32 %v829, 0.0009676536
        %v842 = vmul.f32 %v830, 0.0009676536
        %v843 = vmul.f32 %v831, 0.0009676536
        %v844 = vsub.f32 %v836, %v840
        %v845 = vsub.f32 %v837, %v841
        %v846 = vsub.f32 %v838, %v842
        %v847 = vsub.f32 %v839, %v843
        %v848 = vmul.f32 %v844, %v844
        %v849 = vmul.f32 %v845, %v845
        %v850 = vmul.f32 %v846, %v846
        %v851 = vmul.f32 %v847, %v847
        %v852 = vmul.f32 %v848, -2.5052108e-08
        %v853 = vmul.f32 %v849, -2.5052108e-08
        %v854 = vmul.f32 %v850, -2.5052108e-08
        %v855 = vmul.f32 %v851, -2.5052108e-08
        %v856 = vadd.f32 %v852, 2.7557319e-06
        %v857 = vadd.f32 %v853, 2.7557319e-06
        %v858 = vadd.f32 %v854, 2.7557319e-06
        %v859 = vadd.f32 %v855, 2.7557319e-06
        %v860 = vmul.f32 %v856, %v848
        %v861 = vmul.f32 %v857, %v849
        %v862 = vmul.f32 %v858, %v850
        %v863 = vmul.f32 %v859, %v851
        %v864 = vadd.f32 %v860, -0.0001984127
        %v865 = vadd.f32 %v861, -0.0001984127
        %v866 = vadd.f32 %v862, -0.0001984127
        %v867 = vadd.f32 %v863, -0.0001984127
        %v868 = vmul.f32 %v864, %v848
        %v869 = vmul.f32 %v865, %v849
        %v870 = vmul.f32 %v866, %v850
        %v871 = vmul.f32 %v867, %v851
        %v872 = vadd.f32 %v868, 0.008333334
        %v873 = vadd.f32 %v869, 0.008333334
        %v874 = vadd.f32 %v870, 0.008333334
        %v875 = vadd.f32 %v871, 0.008333334
        %v876 = vmul.f32 %v872, %v848
        %v877 = vmul.f32 %v873, %v849
        %v878 = vmul.f32 %v874, %v850
        %v879 = vmul.f32 %v875, %v851
        %v880 = vadd.f32 %v876, -0.16666667
        %v881 = vadd.f32 %v877, -0.16666667
        %v882 = vadd.f32 %v878, -0.16666667
        %v883 = vadd.f32 %v879, -0.16666667
        %v884 = vmul.f32 %v880, %v848
        %v885 = vmul.f32 %v881, %v849
        %v886 = vmul.f32 %v882, %v850
        %v887 = vmul.f32 %v883, %v851
        %v888 = vadd.f32 %v884, 1.0
        %v889 = vadd.f32 %v885, 1.0
        %v890 = vadd.f32 %v886, 1.0
        %v891 = vadd.f32 %v887, 1.0
        %v892 = vmul.f32 %v888, %v844
        %v893 = vmul.f32 %v889, %v845
        %v894 = vmul.f32 %v890, %v846
        %v895 = vmul.f32 %v891, %v847
        %v896 = vmul.f32 %v828, 0.5
        %v897 = vmul.f32 %v829, 0.5
        %v898 = vmul.f32 %v830, 0.5
        %v899 = vmul.f32 %v831, 0.5
        %v900 = vfloor.f32 %v896
        %v901 = vfloor.f32 %v897
        %v902 = vfloor.f32 %v898
        %v903 = vfloor.f32 %v899
        %v904 = vmul.f32 %v900, 2.0
        %v905 = vmul.f32 %v901, 2.0
        %v906 = vmul.f32 %v902, 2.0
        %v907 = vmul.f32 %v903, 2.0
        %v908 = vsub.f32 %v828, %v904
        %v909 = vsub.f32 %v829, %v905
        %v910 = vsub.f32 %v830, %v906
        %v911 = vsub.f32 %v831, %v907
        %v912 = vmul.f32 %v908, 2.0
        %v913 = vmul.f32 %v909, 2.0
        %v914 = vmul.f32 %v910, 2.0
        %v915 = vmul.f32 %v911, 2.0
        %v916 = vsub.f32 1.0, %v912
        %v917 = vsub.f32 1.0, %v913
        %v918 = vsub.f32 1.0, %v914
        %v919 = vsub.f32 1.0, %v915
        %v920 = vmul.f32 %v892, %v916
        %v921 = vmul.f32 %v893, %v917
        %v922 = vmul.f32 %v894, %v918
        %v923 = vmul.f32 %v895, %v919
        %s924 = scalar_lea.vmem %s2, 64
        %v925 = vld [vmem:[%s924] sm:$0xff]
        %v926 = vld [vmem:[%s924 + $0x8] sm:$0xff]
        %v927 = vld [vmem:[%s924 + $0x10] sm:$0xff]
        %v928 = vld [vmem:[%s924 + $0x18] sm:$0xff]
        %s929 = scalar_lea.vmem %s4, 96
        %v930 = vld [vmem:[%s929] sm:$0xff]
        %v931 = vld [vmem:[%s929 + $0x8] sm:$0xff]
        %v932 = vld [vmem:[%s929 + $0x10] sm:$0xff]
        %v933 = vld [vmem:[%s929 + $0x18] sm:$0xff]
        %935 = vset.pattern.permute.xlu0 0
        %936 = vperm.xlu0 %935, %v930
        %v937 = vpop.permute.xlu0 %936
        %940 = vset.pattern.permute.xlu0 0
        %941 = vperm.xlu0 %940, %v931
        %v942 = vpop.permute.xlu0 %941
        %945 = vset.pattern.permute.xlu0 0
        %946 = vperm.xlu0 %945, %v932
        %v947 = vpop.permute.xlu0 %946
        %950 = vset.pattern.permute.xlu0 0
        %951 = vperm.xlu0 %950, %v933
        %v952 = vpop.permute.xlu0 %951
        %v955 = vsel %vm562, %v925, 0
        %v958 = vsel %vm562, %v926, 0
        %v961 = vsel %vm562, %v927, 0
        %v964 = vsel %vm562, %v928, 0
        %966 = vmatpush.msra.mxu0 0.0
        %967 = vmatpush.msra.mxu0 0.0
        %968 = vmatpush.msra.mxu0 0.0
        %969 = vmatpush.msra.mxu0 0.0
        %970 = vmatpush.msra.mxu0 0.0
        %971 = vmatpush.msra.mxu0 0.0
        %972 = vmatpush.msra.mxu0 0.0
        %973 = vmatpush.msra.mxu0 0.0
        %974 = vmatpush.msra.mxu0 0.0
        %975 = vmatpush.msra.mxu0 0.0
        %976 = vmatpush.msra.mxu0 0.0
        %977 = vmatpush.msra.mxu0 0.0
        %978 = vmatpush.msra.mxu0 %v923
        %979 = vmatpush.msra.mxu0 %v922
        %980 = vmatpush.msra.mxu0 %v921
        %981 = vmatpush.msra.mxu0 %v920
        %982 = vmatmul.f32.gmra.mxu0 %v955
        %v983 = vpop.f32.mrf.mxu0
        %v984 = vadd.f32 %v937, %v983
        %985 = vmatmul.f32.gmra.mxu0 %v958
        %v986 = vpop.f32.mrf.mxu0
        %v987 = vadd.f32 %v942, %v986
        %988 = vmatmul.f32.gmra.mxu0 %v961
        %v989 = vpop.f32.mrf.mxu0
        %v990 = vadd.f32 %v947, %v989
        %991 = vmatmul.f32.gmra.mxu0 %v964
        %v992 = vpop.f32.mrf.mxu0
        %v993 = vadd.f32 %v952, %v992
        %994 = vdwg.mxu0
        %v995 = vmul.f32 %v984, 0.31830987
        %v996 = vmul.f32 %v987, 0.31830987
        %v997 = vmul.f32 %v990, 0.31830987
        %v998 = vmul.f32 %v993, 0.31830987
        %v999 = vround.ne.pseudo %v995
        %v1000 = vround.ne.pseudo %v996
        %v1001 = vround.ne.pseudo %v997
        %v1002 = vround.ne.pseudo %v998
        %v1003 = vmul.f32 %v999, 3.140625
        %v1004 = vmul.f32 %v1000, 3.140625
        %v1005 = vmul.f32 %v1001, 3.140625
        %v1006 = vmul.f32 %v1002, 3.140625
        %v1007 = vsub.f32 %v984, %v1003
        %v1008 = vsub.f32 %v987, %v1004
        %v1009 = vsub.f32 %v990, %v1005
        %v1010 = vsub.f32 %v993, %v1006
        %v1011 = vmul.f32 %v999, 0.0009676536
        %v1012 = vmul.f32 %v1000, 0.0009676536
        %v1013 = vmul.f32 %v1001, 0.0009676536
        %v1014 = vmul.f32 %v1002, 0.0009676536
        %v1015 = vsub.f32 %v1007, %v1011
        %v1016 = vsub.f32 %v1008, %v1012
        %v1017 = vsub.f32 %v1009, %v1013
        %v1018 = vsub.f32 %v1010, %v1014
        %v1019 = vmul.f32 %v1015, %v1015
        %v1020 = vmul.f32 %v1016, %v1016
        %v1021 = vmul.f32 %v1017, %v1017
        %v1022 = vmul.f32 %v1018, %v1018
        %v1023 = vmul.f32 %v1019, -2.5052108e-08
        %v1024 = vmul.f32 %v1020, -2.5052108e-08
        %v1025 = vmul.f32 %v1021, -2.5052108e-08
        %v1026 = vmul.f32 %v1022, -2.5052108e-08
        %v1027 = vadd.f32 %v1023, 2.7557319e-06
        %v1028 = vadd.f32 %v1024, 2.7557319e-06
        %v1029 = vadd.f32 %v1025, 2.7557319e-06
        %v1030 = vadd.f32 %v1026, 2.7557319e-06
        %v1031 = vmul.f32 %v1027, %v1019
        %v1032 = vmul.f32 %v1028, %v1020
        %v1033 = vmul.f32 %v1029, %v1021
        %v1034 = vmul.f32 %v1030, %v1022
        %v1035 = vadd.f32 %v1031, -0.0001984127
        %v1036 = vadd.f32 %v1032, -0.0001984127
        %v1037 = vadd.f32 %v1033, -0.0001984127
        %v1038 = vadd.f32 %v1034, -0.0001984127
        %v1039 = vmul.f32 %v1035, %v1019
        %v1040 = vmul.f32 %v1036, %v1020
        %v1041 = vmul.f32 %v1037, %v1021
        %v1042 = vmul.f32 %v1038, %v1022
        %v1043 = vadd.f32 %v1039, 0.008333334
        %v1044 = vadd.f32 %v1040, 0.008333334
        %v1045 = vadd.f32 %v1041, 0.008333334
        %v1046 = vadd.f32 %v1042, 0.008333334
        %v1047 = vmul.f32 %v1043, %v1019
        %v1048 = vmul.f32 %v1044, %v1020
        %v1049 = vmul.f32 %v1045, %v1021
        %v1050 = vmul.f32 %v1046, %v1022
        %v1051 = vadd.f32 %v1047, -0.16666667
        %v1052 = vadd.f32 %v1048, -0.16666667
        %v1053 = vadd.f32 %v1049, -0.16666667
        %v1054 = vadd.f32 %v1050, -0.16666667
        %v1055 = vmul.f32 %v1051, %v1019
        %v1056 = vmul.f32 %v1052, %v1020
        %v1057 = vmul.f32 %v1053, %v1021
        %v1058 = vmul.f32 %v1054, %v1022
        %v1059 = vadd.f32 %v1055, 1.0
        %v1060 = vadd.f32 %v1056, 1.0
        %v1061 = vadd.f32 %v1057, 1.0
        %v1062 = vadd.f32 %v1058, 1.0
        %v1063 = vmul.f32 %v1059, %v1015
        %v1064 = vmul.f32 %v1060, %v1016
        %v1065 = vmul.f32 %v1061, %v1017
        %v1066 = vmul.f32 %v1062, %v1018
        %v1067 = vmul.f32 %v999, 0.5
        %v1068 = vmul.f32 %v1000, 0.5
        %v1069 = vmul.f32 %v1001, 0.5
        %v1070 = vmul.f32 %v1002, 0.5
        %v1071 = vfloor.f32 %v1067
        %v1072 = vfloor.f32 %v1068
        %v1073 = vfloor.f32 %v1069
        %v1074 = vfloor.f32 %v1070
        %v1075 = vmul.f32 %v1071, 2.0
        %v1076 = vmul.f32 %v1072, 2.0
        %v1077 = vmul.f32 %v1073, 2.0
        %v1078 = vmul.f32 %v1074, 2.0
        %v1079 = vsub.f32 %v999, %v1075
        %v1080 = vsub.f32 %v1000, %v1076
        %v1081 = vsub.f32 %v1001, %v1077
        %v1082 = vsub.f32 %v1002, %v1078
        %v1083 = vmul.f32 %v1079, 2.0
        %v1084 = vmul.f32 %v1080, 2.0
        %v1085 = vmul.f32 %v1081, 2.0
        %v1086 = vmul.f32 %v1082, 2.0
        %v1087 = vsub.f32 1.0, %v1083
        %v1088 = vsub.f32 1.0, %v1084
        %v1089 = vsub.f32 1.0, %v1085
        %v1090 = vsub.f32 1.0, %v1086
        %v1091 = vmul.f32 %v1063, %v1087
        %v1092 = vmul.f32 %v1064, %v1088
        %v1093 = vmul.f32 %v1065, %v1089
        %v1094 = vmul.f32 %v1066, %v1090
        %v1095 = vld [vmem:[%s5] sm:$0xf]
        %v1096 = vld [vmem:[%s6] sm:$0xf]
        %1098 = vset.pattern.permute.xlu0 0
        %1099 = vperm.xlu0 %1098, %v1096
        %v1100 = vpop.permute.xlu0 %1099
        %v1103 = vsel %vm562, %v1095, 0
        %1105 = vmatpush.msra.mxu0 0.0
        %1106 = vmatpush.msra.mxu0 0.0
        %1107 = vmatpush.msra.mxu0 0.0
        %1108 = vmatpush.msra.mxu0 0.0
        %1109 = vmatpush.msra.mxu0 0.0
        %1110 = vmatpush.msra.mxu0 0.0
        %1111 = vmatpush.msra.mxu0 0.0
        %1112 = vmatpush.msra.mxu0 0.0
        %1113 = vmatpush.msra.mxu0 0.0
        %1114 = vmatpush.msra.mxu0 0.0
        %1115 = vmatpush.msra.mxu0 0.0
        %1116 = vmatpush.msra.mxu0 0.0
        %1117 = vmatpush.msra.mxu0 %v1094
        %1118 = vmatpush.msra.mxu0 %v1093
        %1119 = vmatpush.msra.mxu0 %v1092
        %1120 = vmatpush.msra.mxu0 %v1091
        %1121 = vmatmul.f32.gmra.mxu0 %v1103
        %v1122 = vpop.f32.mrf.mxu0
        %v1123 = vadd.f32 %v1100, %v1122
        %1124 = vdwg.mxu0
        %1125 = vst [vmem:[%s284] sm:$0xf] %v1123
        %s1126 = sand.u32 %s181, 1
        %s1127 = scalar_lea.sflag [#allocation3], %s1126
        %s1128 = sand.u32 %s181, 1
        %s1129 = smul.addr %s1128, 4
        %s1130 = scalar_lea.vmem [#allocation2], %s1129
        // Predicated region
        $region49: #{tpu_custom_call.1} parent=47 // pred_check
          %p1131 = pneg %p191
        $region50: #{tpu_custom_call.1} parent=47 // pred_check_branch
          %1133 = sbr.rel (%p1131) target = $region52
        $region51: #{tpu_custom_call.1} parent=47 // pred_region
          %1135 = vsyncadd %s1127, 0
          %s1136 = smul.addr %s21, 4
          %s1137 = scalar_lea.hbm %s7, %s1136
          %s1139 = sshll.u32 %s1130, 4
          %s1140 = int_to_ptr.vmem [resolvable:$true] %s1139
          %s1141 = sshll.u32 %s1137, 4
          %s1142 = int_to_ptr.hbm [resolvable:$true] %s1141
          %1144 = dma.vmem_to_hbm [thread:$0]  %s1140, 64, %s1142, %s1127
        $region52: #{tpu_custom_call.1} parent=47 // pred_fallthru
          _
      $region48: #{tpu_custom_call.1} parent=5 // pred_fallthru
        _
      %p1145 = scmp.le.s32.totalorder 2, %s16
      // Predicated region
      $region53: #{tpu_custom_call.1} parent=5 // pred_check
        %p1146 = pneg %p1145
      $region54: #{tpu_custom_call.1} parent=5 // pred_check_branch
        %1148 = sbr.rel (%p1146) target = $region56
      $region55: #{tpu_custom_call.1} parent=5 // pred_region
        %s1149 = ssub.s32 %s16, 2
        // Predicated region
        $region57: #{tpu_custom_call.1} parent=55 // pred_check
          %p1150 = pneg %p197
        $region58: #{tpu_custom_call.1} parent=55 // pred_check_branch
          %1152 = sbr.rel (%p1150) target = $region60
        $region59: #{tpu_custom_call.1} parent=55 // pred_region
          %s1153 = sand.u32 %s182, 1
          %s1154 = scalar_lea.sflag [#allocation3], %s1153
          %s1155 = sand.u32 %s182, 1
          %s1156 = smul.addr %s1155, 4
          %s1157 = scalar_lea.vmem [#allocation2], %s1156
          %1159 = dma.done %s1154, 64
        $region60: #{tpu_custom_call.1} parent=55 // pred_fallthru
          _
      $region56: #{tpu_custom_call.1} parent=5 // pred_fallthru
        _
    $region6: #{tpu_custom_call.1} parent=1 // loop_footer
      %s20 = sadd.s32 1, %s16
    $region7: #{tpu_custom_call.1} parent=1 // loop_footer_branch
      %15 = sbr.rel target = $region3
    $region8: #{tpu_custom_call.1} parent=1 // loop_exit
      _
    %1160 = vsyncpa [#allocation3], 1
    %s1161 = scalar_lea.sflag [#allocation3], 1
    %1162 = vsyncpa %s1161, 1

</llo_original>
